<compile_context>
chip_gen: v7x
topology: tpu7x:2x2x1
jax: 0.10.0
libtpu: 0.0.40
codegen_flags: <defaults>
</compile_context>

<pallas_src>
import functools

import jax
import jax.numpy as jnp
import numpy as np
from jax.experimental import pallas as pl
from jax.experimental.pallas import tpu as pltpu
from jax.scipy.stats import norm as jnorm


def knn_outlier_kernel(x_ref, w1_ref, b1_ref, w2_ref, b2_ref, t_ref, tsq_ref,
                       thr_ref, out_ref, *, k):
    # ---- backbone forward: bf16 operands into the MXU, f32 accumulation ----
    h = jnp.maximum(
        jnp.dot(x_ref[...], w1_ref[...], preferred_element_type=jnp.float32)
        + b1_ref[...],
        0.0)                                                       # [B, D] f32 features
    preds = (jnp.dot(h, w2_ref[...], preferred_element_type=jnp.float32)
             + b2_ref[...])                                        # [B, C] (model(x))

    # ---- squared Euclidean distances to the fitted bank (t_ref: [D, N]) ----
    # ||t||^2 is a constant of the fitted detector -> precomputed, tsq_ref [1, N].
    f_sq = jnp.sum(h * h, axis=1, keepdims=True)                   # [B, 1]
    cross = jnp.dot(h, t_ref[...], preferred_element_type=jnp.float32)  # [B, N]
    d2 = jnp.maximum(f_sq + tsq_ref[...] - 2.0 * cross, 0.0)       # [B, N] squared dists

    # ---- mean of k smallest distances == kneighbors(...)[0].mean(axis=1) ----
    # sqrt is monotone, so select the k smallest d2 and sqrt only the [B,1] mins.
    b_sz, n = d2.shape
    col = jax.lax.broadcasted_iota(jnp.int32, (b_sz, n), 1)
    acc = jnp.zeros((b_sz, 1), jnp.float32)
    dd = d2
    for _ in range(k):  # k is small & static -> fully unrolled min-extraction
        m = jnp.min(dd, axis=1, keepdims=True)
        acc = acc + jnp.sqrt(m)                                    # sqrt on [B,1] only
        # ties broken by lowest column index, matching ascending-sort semantics;
        # two lane reductions/iter is fine at N_train=64 (see review note).
        idx = jnp.min(jnp.where(dd <= m, col, jnp.int32(n)), axis=1, keepdims=True)
        dd = jnp.where(col == idx, jnp.float32(jnp.inf), dd)
    avg = acc / jnp.float32(k)                                     # [B, 1] mean kNN dist

    # ---- outlier mask (SMEM scalar threshold) + zero-out rows of preds ----
    outlier = avg > thr_ref[0, 0]                                  # [B, 1] bool
    out_ref[...] = jnp.where(outlier, jnp.zeros_like(preds), preds)


def knn_outlier_forward(x_nchw, w1, b1, w2, b2, train_bank_dn, bank_sq,
                        threshold, k):
    b = x_nchw.shape[0]
    din, d_feat = w1.shape
    c = w2.shape[1]
    n_train = train_bank_dn.shape[1]
    assert k <= n_train, "k must not exceed the fitted bank size"

    # bf16 only on the MXU operands that dominate HBM bytes (x, W1).
    x_flat = x_nchw.reshape(b, -1).astype(jnp.bfloat16)
    w1_bf16 = w1.astype(jnp.bfloat16)

    operands = (
        x_flat,
        w1_bf16,
        b1.reshape(1, -1).astype(jnp.float32),
        w2.astype(jnp.float32),
        b2.reshape(1, -1).astype(jnp.float32),
        train_bank_dn.astype(jnp.float32),
        bank_sq.reshape(1, -1).astype(jnp.float32),
        jnp.asarray(threshold, jnp.float32).reshape(1, 1),   # SMEM scalar
    )

    bytes_accessed = int(sum(int(np.prod(o.shape)) * o.dtype.itemsize
                             for o in operands) + b * c * 4)
    cost = pl.CostEstimate(
        flops=int(2 * b * din * d_feat + 2 * b * d_feat * c
                  + 2 * b * d_feat * n_train + 6 * b * n_train),
        transcendentals=int(b * k),
        bytes_accessed=bytes_accessed,
    )

    vmem_spec = pl.BlockSpec(memory_space=pltpu.MemorySpace.VMEM)
    smem_spec = pl.BlockSpec(memory_space=pltpu.MemorySpace.SMEM)

    kernel = functools.partial(knn_outlier_kernel, k=k)
    # Whole-array blocks: everything is << 1 MiB at these shapes.
    # TODO(synk): for production Din / N_train, tile Din (k-axis accumulator)
    # and N_train (running k-smallest in VMEM scratch) with a grid and
    # dimension_semantics=("parallel", ...) so v7x's 64 MiB VMEM / 2nd TC are used.
    return pl.pallas_call(
        kernel,
        out_shape=jax.ShapeDtypeStruct((b, c), jnp.float32),
        in_specs=[vmem_spec] * 7 + [smem_spec],
        out_specs=vmem_spec,
        compiler_params=pltpu.CompilerParams(vmem_limit_bytes=32 * 1024 * 1024),
        cost_estimate=cost,
    )(*operands)


# ----------------------------- init-time glue -------------------------------
def extract_features_bf16(x_nchw, w1, b1):
    """Matches the in-kernel feature path exactly (bf16 operands, f32 accum)."""
    x = x_nchw.reshape(x_nchw.shape[0], -1).astype(jnp.bfloat16)
    h = jnp.dot(x, w1.astype(jnp.bfloat16), preferred_element_type=jnp.float32)
    return jnp.maximum(h + b1, 0.0)


def fit_detector(train_x, w1, b1, k, confidence):
    """Equivalent of _train_detector: sklearn NearestNeighbors fit +
    self-kneighbors (nearest neighbor of each train point is itself, dist 0),
    then threshold = norm.ppf(confidence, mu, sigma).  Also returns the
    precomputed bank squared norms (a constant of the fitted detector)."""
    feats = extract_features_bf16(train_x, w1, b1)                 # [N, D] f32
    sq = jnp.sum(feats * feats, axis=1)
    d2 = sq[:, None] + sq[None, :] - 2.0 * (feats @ feats.T)
    d = jnp.sqrt(jnp.maximum(d2, 0.0))
    dk = jnp.sort(d, axis=1)[:, :k]
    avg = dk.mean(axis=1)
    mu, sigma = jnp.mean(avg), jnp.std(avg)                        # np.std ddof=0
    threshold = jnorm.ppf(confidence, loc=mu, scale=sigma)
    return feats, sq, threshold


if __name__ == "__main__":
    key = jax.random.PRNGKey(0)
    k_w1, k_b1, k_w2, k_b2, k_train, k_x = jax.random.split(key, 6)

    B, C_in, H, W = 2, 4, 16, 16
    Din = C_in * H * W
    D_feat = 32
    n_classes = 10
    N_train = 64
    K = 5
    confidence = 0.99

    # deterministic synthetic "checkpoint"
    w1 = 0.05 * jax.random.normal(k_w1, (Din, D_feat), jnp.float32)
    b1 = 0.05 * jax.random.normal(k_b1, (D_feat,), jnp.float32)
    w2 = 0.05 * jax.random.normal(k_w2, (D_feat, n_classes), jnp.float32)
    b2 = 0.05 * jax.random.normal(k_b2, (n_classes,), jnp.float32)

    # synthetic training dataset -> fit detector + threshold (init-time, plain JAX)
    train_x = jax.random.normal(k_train, (N_train, C_in, H, W), jnp.float32)
    train_feats, bank_sq, threshold = fit_detector(train_x, w1, b1, K, confidence)
    train_bank_dn = jnp.asarray(train_feats.T)                     # [D_feat, N_train]

    # query batch; scale one sample so the outlier-masking branch is exercised
    x = jax.random.normal(k_x, (B, C_in, H, W), jnp.float32)
    x = x.at[1].multiply(6.0)

    out = knn_outlier_forward(x, w1, b1, w2, b2, train_bank_dn, bank_sq,
                              threshold, K)
    out = jax.block_until_ready(out)

    # plain-JAX reference of the exact forward semantics (same bf16 feature path)
    feats = extract_features_bf16(x, w1, b1)
    preds = jnp.dot(feats, w2, preferred_element_type=jnp.float32) + b2
    d2 = jnp.maximum(jnp.sum(feats ** 2, 1)[:, None] + bank_sq[None, :]
                     - 2.0 * jnp.dot(feats, train_feats.T,
                                     preferred_element_type=jnp.float32), 0.0)
    avg = jnp.sqrt(jnp.sort(d2, axis=1)[:, :K]).mean(axis=1)
    ref = jnp.where((avg > threshold)[:, None], jnp.zeros_like(preds), preds)
    np.testing.assert_allclose(np.asarray(out), np.asarray(ref), atol=1e-4, rtol=1e-4)

    print("KERNEL_OK")
</pallas_src>

<mosaic_0001>
module attributes {stable_mosaic.version = 11 : i64} {
  func.func @knn_outlier_kernel(%arg0: memref<2x1024xbf16, #tpu.memory_space<vmem>>, %arg1: memref<1024x32xbf16, #tpu.memory_space<vmem>>, %arg2: memref<1x32xf32, #tpu.memory_space<vmem>>, %arg3: memref<32x10xf32, #tpu.memory_space<vmem>>, %arg4: memref<1x10xf32, #tpu.memory_space<vmem>>, %arg5: memref<32x64xf32, #tpu.memory_space<vmem>>, %arg6: memref<1x64xf32, #tpu.memory_space<vmem>>, %arg7: memref<1x1xf32, #tpu.memory_space<smem>>, %arg8: memref<2x10xf32, #tpu.memory_space<vmem>>) attributes {dimension_semantics = [], scalar_prefetch = 0 : i64, scratch_operands = 0 : i64, tpu.core_type = #tpu.core_type<tc>} {
    %c0 = arith.constant 0 : index
    %c0_0 = arith.constant 0 : index
    %0 = vector.load %arg0[%c0, %c0_0] : memref<2x1024xbf16, #tpu.memory_space<vmem>>, vector<2x1024xbf16>
    %c0_1 = arith.constant 0 : index
    %c0_2 = arith.constant 0 : index
    %1 = vector.load %arg1[%c0_1, %c0_2] : memref<1024x32xbf16, #tpu.memory_space<vmem>>, vector<1024x32xbf16>
    %cst = arith.constant dense<0.000000e+00> : vector<2x32xf32>
    %2 = tpu.matmul %0, %1, %cst {dimension_numbers = #tpu.dot_dimension_numbers<[1], [0], [0], [1], [0, 0, 1, 1], [], []>} : vector<2x1024xbf16>, vector<1024x32xbf16>, vector<2x32xf32> -> vector<2x32xf32>
    %c0_3 = arith.constant 0 : index
    %c0_4 = arith.constant 0 : index
    %3 = vector.load %arg2[%c0_3, %c0_4] : memref<1x32xf32, #tpu.memory_space<vmem>>, vector<1x32xf32>
    %4 = vector.broadcast %3 : vector<1x32xf32> to vector<2x32xf32>
    %5 = arith.addf %2, %4 : vector<2x32xf32>
    %cst_5 = arith.constant 0.000000e+00 : f32
    %6 = vector.broadcast %cst_5 : f32 to vector<2x32xf32>
    %7 = arith.maximumf %5, %6 : vector<2x32xf32>
    %c0_6 = arith.constant 0 : index
    %c0_7 = arith.constant 0 : index
    %8 = vector.load %arg3[%c0_6, %c0_7] : memref<32x10xf32, #tpu.memory_space<vmem>>, vector<32x10xf32>
    %cst_8 = arith.constant dense<0.000000e+00> : vector<2x10xf32>
    %9 = tpu.matmul %7, %8, %cst_8 {dimension_numbers = #tpu.dot_dimension_numbers<[1], [0], [0], [1], [0, 0, 1, 1], [], []>} : vector<2x32xf32>, vector<32x10xf32>, vector<2x10xf32> -> vector<2x10xf32>
    %c0_9 = arith.constant 0 : index
    %c0_10 = arith.constant 0 : index
    %10 = vector.load %arg4[%c0_9, %c0_10] : memref<1x10xf32, #tpu.memory_space<vmem>>, vector<1x10xf32>
    %11 = vector.broadcast %10 : vector<1x10xf32> to vector<2x10xf32>
    %12 = arith.addf %9, %11 : vector<2x10xf32>
    %13 = arith.mulf %7, %7 : vector<2x32xf32>
    %cst_11 = arith.constant dense<0.000000e+00> : vector<2xf32>
    %14 = vector.multi_reduction <add>, %13, %cst_11 [1] : vector<2x32xf32> to vector<2xf32>
    %15 = vector.shape_cast %14 : vector<2xf32> to vector<2x1xf32>
    %c0_12 = arith.constant 0 : index
    %c0_13 = arith.constant 0 : index
    %16 = vector.load %arg5[%c0_12, %c0_13] : memref<32x64xf32, #tpu.memory_space<vmem>>, vector<32x64xf32>
    %cst_14 = arith.constant dense<0.000000e+00> : vector<2x64xf32>
    %17 = tpu.matmul %7, %16, %cst_14 {dimension_numbers = #tpu.dot_dimension_numbers<[1], [0], [0], [1], [0, 0, 1, 1], [], []>} : vector<2x32xf32>, vector<32x64xf32>, vector<2x64xf32> -> vector<2x64xf32>
    %c0_15 = arith.constant 0 : index
    %c0_16 = arith.constant 0 : index
    %18 = vector.load %arg6[%c0_15, %c0_16] : memref<1x64xf32, #tpu.memory_space<vmem>>, vector<1x64xf32>
    %19 = vector.broadcast %15 : vector<2x1xf32> to vector<2x64xf32>
    %20 = vector.broadcast %18 : vector<1x64xf32> to vector<2x64xf32>
    %21 = arith.addf %19, %20 : vector<2x64xf32>
    %cst_17 = arith.constant 2.000000e+00 : f32
    %22 = vector.broadcast %cst_17 : f32 to vector<2x64xf32>
    %23 = arith.mulf %22, %17 : vector<2x64xf32>
    %24 = arith.subf %21, %23 : vector<2x64xf32>
    %cst_18 = arith.constant 0.000000e+00 : f32
    %25 = vector.broadcast %cst_18 : f32 to vector<2x64xf32>
    %26 = arith.maximumf %24, %25 : vector<2x64xf32>
    %27 = tpu.iota {dimensions = array<i32: 1>} : vector<2x64xi32>
    %cst_19 = arith.constant 0.000000e+00 : f32
    %28 = vector.broadcast %cst_19 : f32 to vector<2x1xf32>
    %cst_20 = arith.constant dense<0x7F800000> : vector<2xf32>
    %29 = vector.multi_reduction <minimumf>, %26, %cst_20 [1] : vector<2x64xf32> to vector<2xf32>
    %30 = vector.shape_cast %29 : vector<2xf32> to vector<2x1xf32>
    %31 = math.sqrt %30 : vector<2x1xf32>
    %32 = arith.addf %28, %31 : vector<2x1xf32>
    %33 = vector.broadcast %30 : vector<2x1xf32> to vector<2x64xf32>
    %34 = arith.cmpf ole, %26, %33 : vector<2x64xf32>
    %c64_i32 = arith.constant 64 : i32
    %35 = vector.broadcast %c64_i32 : i32 to vector<2x64xi32>
    %36 = arith.select %34, %27, %35 : vector<2x64xi1>, vector<2x64xi32>
    %cst_21 = arith.constant dense<2147483647> : vector<2xi32>
    %37 = vector.multi_reduction <minsi>, %36, %cst_21 [1] : vector<2x64xi32> to vector<2xi32>
    %38 = vector.shape_cast %37 : vector<2xi32> to vector<2x1xi32>
    %39 = vector.broadcast %38 : vector<2x1xi32> to vector<2x64xi32>
    %40 = arith.cmpi eq, %27, %39 : vector<2x64xi32>
    %cst_22 = arith.constant 0x7F800000 : f32
    %41 = vector.broadcast %cst_22 : f32 to vector<2x64xf32>
    %42 = arith.select %40, %41, %26 : vector<2x64xi1>, vector<2x64xf32>
    %cst_23 = arith.constant dense<0x7F800000> : vector<2xf32>
    %43 = vector.multi_reduction <minimumf>, %42, %cst_23 [1] : vector<2x64xf32> to vector<2xf32>
    %44 = vector.shape_cast %43 : vector<2xf32> to vector<2x1xf32>
    %45 = math.sqrt %44 : vector<2x1xf32>
    %46 = arith.addf %32, %45 : vector<2x1xf32>
    %47 = vector.broadcast %44 : vector<2x1xf32> to vector<2x64xf32>
    %48 = arith.cmpf ole, %42, %47 : vector<2x64xf32>
    %c64_i32_24 = arith.constant 64 : i32
    %49 = vector.broadcast %c64_i32_24 : i32 to vector<2x64xi32>
    %50 = arith.select %48, %27, %49 : vector<2x64xi1>, vector<2x64xi32>
    %cst_25 = arith.constant dense<2147483647> : vector<2xi32>
    %51 = vector.multi_reduction <minsi>, %50, %cst_25 [1] : vector<2x64xi32> to vector<2xi32>
    %52 = vector.shape_cast %51 : vector<2xi32> to vector<2x1xi32>
    %53 = vector.broadcast %52 : vector<2x1xi32> to vector<2x64xi32>
    %54 = arith.cmpi eq, %27, %53 : vector<2x64xi32>
    %cst_26 = arith.constant 0x7F800000 : f32
    %55 = vector.broadcast %cst_26 : f32 to vector<2x64xf32>
    %56 = arith.select %54, %55, %42 : vector<2x64xi1>, vector<2x64xf32>
    %cst_27 = arith.constant dense<0x7F800000> : vector<2xf32>
    %57 = vector.multi_reduction <minimumf>, %56, %cst_27 [1] : vector<2x64xf32> to vector<2xf32>
    %58 = vector.shape_cast %57 : vector<2xf32> to vector<2x1xf32>
    %59 = math.sqrt %58 : vector<2x1xf32>
    %60 = arith.addf %46, %59 : vector<2x1xf32>
    %61 = vector.broadcast %58 : vector<2x1xf32> to vector<2x64xf32>
    %62 = arith.cmpf ole, %56, %61 : vector<2x64xf32>
    %c64_i32_28 = arith.constant 64 : i32
    %63 = vector.broadcast %c64_i32_28 : i32 to vector<2x64xi32>
    %64 = arith.select %62, %27, %63 : vector<2x64xi1>, vector<2x64xi32>
    %cst_29 = arith.constant dense<2147483647> : vector<2xi32>
    %65 = vector.multi_reduction <minsi>, %64, %cst_29 [1] : vector<2x64xi32> to vector<2xi32>
    %66 = vector.shape_cast %65 : vector<2xi32> to vector<2x1xi32>
    %67 = vector.broadcast %66 : vector<2x1xi32> to vector<2x64xi32>
    %68 = arith.cmpi eq, %27, %67 : vector<2x64xi32>
    %cst_30 = arith.constant 0x7F800000 : f32
    %69 = vector.broadcast %cst_30 : f32 to vector<2x64xf32>
    %70 = arith.select %68, %69, %56 : vector<2x64xi1>, vector<2x64xf32>
    %cst_31 = arith.constant dense<0x7F800000> : vector<2xf32>
    %71 = vector.multi_reduction <minimumf>, %70, %cst_31 [1] : vector<2x64xf32> to vector<2xf32>
    %72 = vector.shape_cast %71 : vector<2xf32> to vector<2x1xf32>
    %73 = math.sqrt %72 : vector<2x1xf32>
    %74 = arith.addf %60, %73 : vector<2x1xf32>
    %75 = vector.broadcast %72 : vector<2x1xf32> to vector<2x64xf32>
    %76 = arith.cmpf ole, %70, %75 : vector<2x64xf32>
    %c64_i32_32 = arith.constant 64 : i32
    %77 = vector.broadcast %c64_i32_32 : i32 to vector<2x64xi32>
    %78 = arith.select %76, %27, %77 : vector<2x64xi1>, vector<2x64xi32>
    %cst_33 = arith.constant dense<2147483647> : vector<2xi32>
    %79 = vector.multi_reduction <minsi>, %78, %cst_33 [1] : vector<2x64xi32> to vector<2xi32>
    %80 = vector.shape_cast %79 : vector<2xi32> to vector<2x1xi32>
    %81 = vector.broadcast %80 : vector<2x1xi32> to vector<2x64xi32>
    %82 = arith.cmpi eq, %27, %81 : vector<2x64xi32>
    %cst_34 = arith.constant 0x7F800000 : f32
    %83 = vector.broadcast %cst_34 : f32 to vector<2x64xf32>
    %84 = arith.select %82, %83, %70 : vector<2x64xi1>, vector<2x64xf32>
    %cst_35 = arith.constant dense<0x7F800000> : vector<2xf32>
    %85 = vector.multi_reduction <minimumf>, %84, %cst_35 [1] : vector<2x64xf32> to vector<2xf32>
    %86 = vector.shape_cast %85 : vector<2xf32> to vector<2x1xf32>
    %87 = math.sqrt %86 : vector<2x1xf32>
    %88 = arith.addf %74, %87 : vector<2x1xf32>
    %cst_36 = arith.constant 5.000000e+00 : f32
    %89 = vector.broadcast %cst_36 : f32 to vector<2x1xf32>
    %90 = arith.divf %88, %89 : vector<2x1xf32>
    %c0_37 = arith.constant 0 : index
    %c0_38 = arith.constant 0 : index
    %91 = memref.load %arg7[%c0_37, %c0_38] : memref<1x1xf32, #tpu.memory_space<smem>>
    %92 = vector.broadcast %91 : f32 to vector<2x1xf32>
    %93 = arith.cmpf ogt, %90, %92 : vector<2x1xf32>
    %cst_39 = arith.constant 0.000000e+00 : f32
    %94 = vector.broadcast %cst_39 : f32 to vector<2x10xf32>
    %95 = vector.shape_cast %93 : vector<2x1xi1> to vector<2x1xi1>
    %96 = vector.broadcast %95 : vector<2x1xi1> to vector<2x10xi1>
    %97 = arith.select %96, %94, %12 : vector<2x10xi1>, vector<2x10xf32>
    %c0_40 = arith.constant 0 : index
    %c0_41 = arith.constant 0 : index
    %98 = vector.load %arg8[%c0_40, %c0_41] : memref<2x10xf32, #tpu.memory_space<vmem>>, vector<2x10xf32>
    tpu.vector_store %arg8[%c0_40, %c0_41], %97 {strides = array<i32>} : memref<2x10xf32, #tpu.memory_space<vmem>>, vector<2x10xf32>,
    return
  }
}

</mosaic_0001>

<llo_original>
// kernel: tpu_custom_call.1
$region0: #{tpu_custom_call.1}
  #allocation0 [shape = 'u32[]', space=smem, size = 0x4, offset = 0x4, fixed_abs, tag = 'smem constant byte address 0x4 - core index']
  #allocation1 [shape = 'u32[144,128]{1,0:T(1,128)}', space=vmem, size = 0x12000, scoped, tag = 'internal scratch']
  #allocation2 [shape = 'f32[1,1]{1,0:T(1,128)S(6)}', space=smem, size = 0x200, scoped, tag = 'scoped memory for tpu_custom_call.1']
  %s0 = inlined_call_operand.vmem [shape: bf16[2,1024], index: 0, kind: input, shape index: {}]
  %s1 = inlined_call_operand.vmem [shape: bf16[1024,32], index: 1, kind: input, shape index: {}]
  %s2 = inlined_call_operand.vmem [shape: f32[1,32], index: 2, kind: input, shape index: {}]
  %s3 = inlined_call_operand.vmem [shape: f32[32,10], index: 3, kind: input, shape index: {}]
  %s4 = inlined_call_operand.vmem [shape: f32[1,10], index: 4, kind: input, shape index: {}]
  %s5 = inlined_call_operand.vmem [shape: f32[32,64], index: 5, kind: input, shape index: {}]
  %s6 = inlined_call_operand.vmem [shape: f32[1,64], index: 6, kind: input, shape index: {}]
  %s7 = inlined_call_operand.<no memory space> [shape: f32[1,1], index: 7, kind: input, shape index: {}]
  %s8 = inlined_call_operand.hbm [shape: f32[2,10], index: 8, kind: output, shape index: {}]
  %s9 = sld [smem:[#allocation0]]
  $region42: #{tpu_custom_call.1} parent=0
    _
  %s11 = ssub.s32 1, %s9
  %s12 = scalar_select 0, %s11, %s9
  %13 = sst [smem:[#allocation2]] %s7
  $region1: #{tpu_custom_call.1} parent=0
    #allocation3 [shape = 'u8[1024]{0}', space=vmem, size = 0x400, scoped, tag = 'output window, operand 0, single buffered']
    #allocation4 [shape = 's32[1]{0}', space=sflag, size = 0x4, scoped, tag = 'scoped memory for tpu_custom_call.1']
    %14 = vsyncpa [#allocation4], 0
    // Predicated region
    $region2: #{tpu_custom_call.1} parent=1 // pred_check
      _
    $region3: #{tpu_custom_call.1} parent=1 // pred_check_branch
      %16 = sbr.rel (0) target = $region5
    $region4: #{tpu_custom_call.1} parent=1 // pred_region
      _
    $region5: #{tpu_custom_call.1} parent=1 // pred_fallthru
      _
    // Predicated region
    $region6: #{tpu_custom_call.1} parent=1 // pred_check
      _
    $region7: #{tpu_custom_call.1} parent=1 // pred_check_branch
      %18 = sbr.rel (0) target = $region9
    $region8: #{tpu_custom_call.1} parent=1 // pred_region
      _
    $region9: #{tpu_custom_call.1} parent=1 // pred_fallthru
      _
    // Predicated region
    $region10: #{tpu_custom_call.1} parent=1 // pred_check
      _
    $region11: #{tpu_custom_call.1} parent=1 // pred_check_branch
      %20 = sbr.rel (0) target = $region13
    $region12: #{tpu_custom_call.1} parent=1 // pred_region
      _
    $region13: #{tpu_custom_call.1} parent=1 // pred_fallthru
      _
    // Predicated region
    $region14: #{tpu_custom_call.1} parent=1 // pred_check
      _
    $region15: #{tpu_custom_call.1} parent=1 // pred_check_branch
      %22 = sbr.rel (0) target = $region17
    $region16: #{tpu_custom_call.1} parent=1 // pred_region
      _
    $region17: #{tpu_custom_call.1} parent=1 // pred_fallthru
      _
    // Predicated region
    $region18: #{tpu_custom_call.1} parent=1 // pred_check
      _
    $region19: #{tpu_custom_call.1} parent=1 // pred_check_branch
      %24 = sbr.rel (0) target = $region21
    $region20: #{tpu_custom_call.1} parent=1 // pred_region
      _
    $region21: #{tpu_custom_call.1} parent=1 // pred_fallthru
      _
    // Predicated region
    $region22: #{tpu_custom_call.1} parent=1 // pred_check
      _
    $region23: #{tpu_custom_call.1} parent=1 // pred_check_branch
      %26 = sbr.rel (0) target = $region25
    $region24: #{tpu_custom_call.1} parent=1 // pred_region
      _
    $region25: #{tpu_custom_call.1} parent=1 // pred_fallthru
      _
    // Predicated region
    $region26: #{tpu_custom_call.1} parent=1 // pred_check
      _
    $region27: #{tpu_custom_call.1} parent=1 // pred_check_branch
      %28 = sbr.rel (0) target = $region29
    $region28: #{tpu_custom_call.1} parent=1 // pred_region
      _
    $region29: #{tpu_custom_call.1} parent=1 // pred_fallthru
      _
    // Predicated region
    $region30: #{tpu_custom_call.1} parent=1 // pred_check
      _
    $region31: #{tpu_custom_call.1} parent=1 // pred_check_branch
      %30 = sbr.rel (0) target = $region33
    $region32: #{tpu_custom_call.1} parent=1 // pred_region
      _
    $region33: #{tpu_custom_call.1} parent=1 // pred_fallthru
      _
    %v32 = vld [vmem:[%s0] sm:$0xff]
    %v33 = vld [vmem:[%s1] sm:$0xf]
    %v34 = vld [vmem:[%s1 + $0x4] sm:$0xf]
    %v35 = vld [vmem:[%s1 + $0x8] sm:$0xf]
    %v36 = vld [vmem:[%s1 + $0xc] sm:$0xf]
    %v37 = vld [vmem:[%s1 + $0x10] sm:$0xf]
    %v38 = vld [vmem:[%s1 + $0x14] sm:$0xf]
    %v39 = vld [vmem:[%s1 + $0x18] sm:$0xf]
    %v40 = vld [vmem:[%s1 + $0x1c] sm:$0xf]
    %v41 = vld [vmem:[%s1 + $0x20] sm:$0xf]
    %v42 = vld [vmem:[%s1 + $0x24] sm:$0xf]
    %v43 = vld [vmem:[%s1 + $0x28] sm:$0xf]
    %v44 = vld [vmem:[%s1 + $0x2c] sm:$0xf]
    %v45 = vld [vmem:[%s1 + $0x30] sm:$0xf]
    %v46 = vld [vmem:[%s1 + $0x34] sm:$0xf]
    %v47 = vld [vmem:[%s1 + $0x38] sm:$0xf]
    %v48 = vld [vmem:[%s1 + $0x3c] sm:$0xf]
    %v49 = vld [vmem:[%s1 + $0x40] sm:$0xf]
    %v50 = vld [vmem:[%s1 + $0x44] sm:$0xf]
    %v51 = vld [vmem:[%s1 + $0x48] sm:$0xf]
    %v52 = vld [vmem:[%s1 + $0x4c] sm:$0xf]
    %v53 = vld [vmem:[%s1 + $0x50] sm:$0xf]
    %v54 = vld [vmem:[%s1 + $0x54] sm:$0xf]
    %v55 = vld [vmem:[%s1 + $0x58] sm:$0xf]
    %v56 = vld [vmem:[%s1 + $0x5c] sm:$0xf]
    %v57 = vld [vmem:[%s1 + $0x60] sm:$0xf]
    %v58 = vld [vmem:[%s1 + $0x64] sm:$0xf]
    %v59 = vld [vmem:[%s1 + $0x68] sm:$0xf]
    %v60 = vld [vmem:[%s1 + $0x6c] sm:$0xf]
    %v61 = vld [vmem:[%s1 + $0x70] sm:$0xf]
    %v62 = vld [vmem:[%s1 + $0x74] sm:$0xf]
    %v63 = vld [vmem:[%s1 + $0x78] sm:$0xf]
    %v64 = vld [vmem:[%s1 + $0x7c] sm:$0xf]
    %v65 = vld [vmem:[%s1 + $0x80] sm:$0xf]
    %v66 = vld [vmem:[%s1 + $0x84] sm:$0xf]
    %v67 = vld [vmem:[%s1 + $0x88] sm:$0xf]
    %v68 = vld [vmem:[%s1 + $0x8c] sm:$0xf]
    %v69 = vld [vmem:[%s1 + $0x90] sm:$0xf]
    %v70 = vld [vmem:[%s1 + $0x94] sm:$0xf]
    %v71 = vld [vmem:[%s1 + $0x98] sm:$0xf]
    %v72 = vld [vmem:[%s1 + $0x9c] sm:$0xf]
    %v73 = vld [vmem:[%s1 + $0xa0] sm:$0xf]
    %v74 = vld [vmem:[%s1 + $0xa4] sm:$0xf]
    %v75 = vld [vmem:[%s1 + $0xa8] sm:$0xf]
    %v76 = vld [vmem:[%s1 + $0xac] sm:$0xf]
    %v77 = vld [vmem:[%s1 + $0xb0] sm:$0xf]
    %v78 = vld [vmem:[%s1 + $0xb4] sm:$0xf]
    %v79 = vld [vmem:[%s1 + $0xb8] sm:$0xf]
    %v80 = vld [vmem:[%s1 + $0xbc] sm:$0xf]
    %v81 = vld [vmem:[%s1 + $0xc0] sm:$0xf]
    %v82 = vld [vmem:[%s1 + $0xc4] sm:$0xf]
    %v83 = vld [vmem:[%s1 + $0xc8] sm:$0xf]
    %v84 = vld [vmem:[%s1 + $0xcc] sm:$0xf]
    %v85 = vld [vmem:[%s1 + $0xd0] sm:$0xf]
    %v86 = vld [vmem:[%s1 + $0xd4] sm:$0xf]
    %v87 = vld [vmem:[%s1 + $0xd8] sm:$0xf]
    %v88 = vld [vmem:[%s1 + $0xdc] sm:$0xf]
    %v89 = vld [vmem:[%s1 + $0xe0] sm:$0xf]
    %v90 = vld [vmem:[%s1 + $0xe4] sm:$0xf]
    %v91 = vld [vmem:[%s1 + $0xe8] sm:$0xf]
    %v92 = vld [vmem:[%s1 + $0xec] sm:$0xf]
    %v93 = vld [vmem:[%s1 + $0xf0] sm:$0xf]
    %v94 = vld [vmem:[%s1 + $0xf4] sm:$0xf]
    %v95 = vld [vmem:[%s1 + $0xf8] sm:$0xf]
    %v96 = vld [vmem:[%s1 + $0xfc] sm:$0xf]
    %v97 = vld [vmem:[%s1 + $0x100] sm:$0xf]
    %v98 = vld [vmem:[%s1 + $0x104] sm:$0xf]
    %v99 = vld [vmem:[%s1 + $0x108] sm:$0xf]
    %v100 = vld [vmem:[%s1 + $0x10c] sm:$0xf]
    %v101 = vld [vmem:[%s1 + $0x110] sm:$0xf]
    %v102 = vld [vmem:[%s1 + $0x114] sm:$0xf]
    %v103 = vld [vmem:[%s1 + $0x118] sm:$0xf]
    %v104 = vld [vmem:[%s1 + $0x11c] sm:$0xf]
    %v105 = vld [vmem:[%s1 + $0x120] sm:$0xf]
    %v106 = vld [vmem:[%s1 + $0x124] sm:$0xf]
    %v107 = vld [vmem:[%s1 + $0x128] sm:$0xf]
    %v108 = vld [vmem:[%s1 + $0x12c] sm:$0xf]
    %v109 = vld [vmem:[%s1 + $0x130] sm:$0xf]
    %v110 = vld [vmem:[%s1 + $0x134] sm:$0xf]
    %v111 = vld [vmem:[%s1 + $0x138] sm:$0xf]
    %v112 = vld [vmem:[%s1 + $0x13c] sm:$0xf]
    %v113 = vld [vmem:[%s1 + $0x140] sm:$0xf]
    %v114 = vld [vmem:[%s1 + $0x144] sm:$0xf]
    %v115 = vld [vmem:[%s1 + $0x148] sm:$0xf]
    %v116 = vld [vmem:[%s1 + $0x14c] sm:$0xf]
    %v117 = vld [vmem:[%s1 + $0x150] sm:$0xf]
    %v118 = vld [vmem:[%s1 + $0x154] sm:$0xf]
    %v119 = vld [vmem:[%s1 + $0x158] sm:$0xf]
    %v120 = vld [vmem:[%s1 + $0x15c] sm:$0xf]
    %v121 = vld [vmem:[%s1 + $0x160] sm:$0xf]
    %v122 = vld [vmem:[%s1 + $0x164] sm:$0xf]
    %v123 = vld [vmem:[%s1 + $0x168] sm:$0xf]
    %v124 = vld [vmem:[%s1 + $0x16c] sm:$0xf]
    %v125 = vld [vmem:[%s1 + $0x170] sm:$0xf]
    %v126 = vld [vmem:[%s1 + $0x174] sm:$0xf]
    %v127 = vld [vmem:[%s1 + $0x178] sm:$0xf]
    %v128 = vld [vmem:[%s1 + $0x17c] sm:$0xf]
    %v129 = vld [vmem:[%s1 + $0x180] sm:$0xf]
    %v130 = vld [vmem:[%s1 + $0x184] sm:$0xf]
    %v131 = vld [vmem:[%s1 + $0x188] sm:$0xf]
    %v132 = vld [vmem:[%s1 + $0x18c] sm:$0xf]
    %v133 = vld [vmem:[%s1 + $0x190] sm:$0xf]
    %v134 = vld [vmem:[%s1 + $0x194] sm:$0xf]
    %v135 = vld [vmem:[%s1 + $0x198] sm:$0xf]
    %v136 = vld [vmem:[%s1 + $0x19c] sm:$0xf]
    %v137 = vld [vmem:[%s1 + $0x1a0] sm:$0xf]
    %v138 = vld [vmem:[%s1 + $0x1a4] sm:$0xf]
    %v139 = vld [vmem:[%s1 + $0x1a8] sm:$0xf]
    %v140 = vld [vmem:[%s1 + $0x1ac] sm:$0xf]
    %v141 = vld [vmem:[%s1 + $0x1b0] sm:$0xf]
    %v142 = vld [vmem:[%s1 + $0x1b4] sm:$0xf]
    %v143 = vld [vmem:[%s1 + $0x1b8] sm:$0xf]
    %v144 = vld [vmem:[%s1 + $0x1bc] sm:$0xf]
    %v145 = vld [vmem:[%s1 + $0x1c0] sm:$0xf]
    %v146 = vld [vmem:[%s1 + $0x1c4] sm:$0xf]
    %v147 = vld [vmem:[%s1 + $0x1c8] sm:$0xf]
    %v148 = vld [vmem:[%s1 + $0x1cc] sm:$0xf]
    %v149 = vld [vmem:[%s1 + $0x1d0] sm:$0xf]
    %v150 = vld [vmem:[%s1 + $0x1d4] sm:$0xf]
    %v151 = vld [vmem:[%s1 + $0x1d8] sm:$0xf]
    %v152 = vld [vmem:[%s1 + $0x1dc] sm:$0xf]
    %v153 = vld [vmem:[%s1 + $0x1e0] sm:$0xf]
    %v154 = vld [vmem:[%s1 + $0x1e4] sm:$0xf]
    %v155 = vld [vmem:[%s1 + $0x1e8] sm:$0xf]
    %v156 = vld [vmem:[%s1 + $0x1ec] sm:$0xf]
    %v157 = vld [vmem:[%s1 + $0x1f0] sm:$0xf]
    %v158 = vld [vmem:[%s1 + $0x1f4] sm:$0xf]
    %v159 = vld [vmem:[%s1 + $0x1f8] sm:$0xf]
    %v160 = vld [vmem:[%s1 + $0x1fc] sm:$0xf]
    %v161 = vld [vmem:[%s2] sm:$0x1]
    %v163 = vlaneseq
    %v164 = vshrl.u32 %v163, 7
    %v165 = vsub.s32 0, %v164
    %v166 = vrot.slane %v161, %v165
    %v169 = vcombine.high %v32, %v32
    %v171 = vunpack.c.l.s4 1966171168
    %v172 = vunpack.c.0.s8 %v171
    %v173 = vlaneseq
    %v174 = vshrl.u32 %v173, 7
    %v175 = vsub.s32 %v172, %v174
    %v176 = vrot.slane %v32, %v175
    %v178 = vunpack.c.l.s4 1966171168
    %v179 = vunpack.c.0.s8 %v178
    %v180 = vlaneseq
    %v181 = vshrl.u32 %v180, 7
    %v182 = vsub.s32 %v179, %v181
    %v183 = vrot.slane %v169, %v182
    %v184 = vcombine.high %v176, %v176
    %v185 = vcombine.high %v183, %v183
    %v187 = vunpack.c.l.s4 1966171168
    %v188 = vunpack.c.0.s8 %v187
    %v189 = vlaneseq
    %v190 = vshrl.u32 %v189, 7
    %v191 = vsub.s32 %v188, %v190
    %v192 = vrot.slane %v176, %v191
    %v194 = vunpack.c.l.s4 1966171168
    %v195 = vunpack.c.0.s8 %v194
    %v196 = vlaneseq
    %v197 = vshrl.u32 %v196, 7
    %v198 = vsub.s32 %v195, %v197
    %v199 = vrot.slane %v183, %v198
    %v201 = vunpack.c.l.s4 1966171168
    %v202 = vunpack.c.0.s8 %v201
    %v203 = vlaneseq
    %v204 = vshrl.u32 %v203, 7
    %v205 = vsub.s32 %v202, %v204
    %v206 = vrot.slane %v184, %v205
    %v208 = vunpack.c.l.s4 1966171168
    %v209 = vunpack.c.0.s8 %v208
    %v210 = vlaneseq
    %v211 = vshrl.u32 %v210, 7
    %v212 = vsub.s32 %v209, %v211
    %v213 = vrot.slane %v185, %v212
    %v214 = vcombine.high %v192, %v192
    %v215 = vcombine.high %v199, %v199
    %v216 = vcombine.high %v206, %v206
    %v217 = vcombine.high %v213, %v213
    %v354 = vunpack.c.l.b16 %v33
    %v355 = vunpack.c.l.b16 %v34
    %v356 = vunpack.c.l.b16 %v35
    %v357 = vunpack.c.l.b16 %v36
    %v358 = vunpack.c.l.b16 %v37
    %v359 = vunpack.c.l.b16 %v38
    %v360 = vunpack.c.l.b16 %v39
    %v361 = vunpack.c.l.b16 %v40
    %v362 = vunpack.c.l.b16 %v41
    %v363 = vunpack.c.l.b16 %v42
    %v364 = vunpack.c.l.b16 %v43
    %v365 = vunpack.c.l.b16 %v44
    %v366 = vunpack.c.l.b16 %v45
    %v367 = vunpack.c.l.b16 %v46
    %v368 = vunpack.c.l.b16 %v47
    %v369 = vunpack.c.l.b16 %v48
    %v370 = vunpack.c.l.b16 %v49
    %v371 = vunpack.c.l.b16 %v50
    %v372 = vunpack.c.l.b16 %v51
    %v373 = vunpack.c.l.b16 %v52
    %v374 = vunpack.c.l.b16 %v53
    %v375 = vunpack.c.l.b16 %v54
    %v376 = vunpack.c.l.b16 %v55
    %v377 = vunpack.c.l.b16 %v56
    %v378 = vunpack.c.l.b16 %v57
    %v379 = vunpack.c.l.b16 %v58
    %v380 = vunpack.c.l.b16 %v59
    %v381 = vunpack.c.l.b16 %v60
    %v382 = vunpack.c.l.b16 %v61
    %v383 = vunpack.c.l.b16 %v62
    %v384 = vunpack.c.l.b16 %v63
    %v385 = vunpack.c.l.b16 %v64
    %v386 = vunpack.c.l.b16 %v65
    %v387 = vunpack.c.l.b16 %v66
    %v388 = vunpack.c.l.b16 %v67
    %v389 = vunpack.c.l.b16 %v68
    %v390 = vunpack.c.l.b16 %v69
    %v391 = vunpack.c.l.b16 %v70
    %v392 = vunpack.c.l.b16 %v71
    %v393 = vunpack.c.l.b16 %v72
    %v394 = vunpack.c.l.b16 %v73
    %v395 = vunpack.c.l.b16 %v74
    %v396 = vunpack.c.l.b16 %v75
    %v397 = vunpack.c.l.b16 %v76
    %v398 = vunpack.c.l.b16 %v77
    %v399 = vunpack.c.l.b16 %v78
    %v400 = vunpack.c.l.b16 %v79
    %v401 = vunpack.c.l.b16 %v80
    %v402 = vunpack.c.l.b16 %v81
    %v403 = vunpack.c.l.b16 %v82
    %v404 = vunpack.c.l.b16 %v83
    %v405 = vunpack.c.l.b16 %v84
    %v406 = vunpack.c.l.b16 %v85
    %v407 = vunpack.c.l.b16 %v86
    %v408 = vunpack.c.l.b16 %v87
    %v409 = vunpack.c.l.b16 %v88
    %v410 = vunpack.c.l.b16 %v89
    %v411 = vunpack.c.l.b16 %v90
    %v412 = vunpack.c.l.b16 %v91
    %v413 = vunpack.c.l.b16 %v92
    %v414 = vunpack.c.l.b16 %v93
    %v415 = vunpack.c.l.b16 %v94
    %v416 = vunpack.c.l.b16 %v95
    %v417 = vunpack.c.l.b16 %v96
    %v418 = vunpack.c.l.b16 %v97
    %v419 = vunpack.c.l.b16 %v98
    %v420 = vunpack.c.l.b16 %v99
    %v421 = vunpack.c.l.b16 %v100
    %v422 = vunpack.c.l.b16 %v101
    %v423 = vunpack.c.l.b16 %v102
    %v424 = vunpack.c.l.b16 %v103
    %v425 = vunpack.c.l.b16 %v104
    %v426 = vunpack.c.l.b16 %v105
    %v427 = vunpack.c.l.b16 %v106
    %v428 = vunpack.c.l.b16 %v107
    %v429 = vunpack.c.l.b16 %v108
    %v430 = vunpack.c.l.b16 %v109
    %v431 = vunpack.c.l.b16 %v110
    %v432 = vunpack.c.l.b16 %v111
    %v433 = vunpack.c.l.b16 %v112
    %v434 = vunpack.c.l.b16 %v113
    %v435 = vunpack.c.l.b16 %v114
    %v436 = vunpack.c.l.b16 %v115
    %v437 = vunpack.c.l.b16 %v116
    %v438 = vunpack.c.l.b16 %v117
    %v439 = vunpack.c.l.b16 %v118
    %v440 = vunpack.c.l.b16 %v119
    %v441 = vunpack.c.l.b16 %v120
    %v442 = vunpack.c.l.b16 %v121
    %v443 = vunpack.c.l.b16 %v122
    %v444 = vunpack.c.l.b16 %v123
    %v445 = vunpack.c.l.b16 %v124
    %v446 = vunpack.c.l.b16 %v125
    %v447 = vunpack.c.l.b16 %v126
    %v448 = vunpack.c.l.b16 %v127
    %v449 = vunpack.c.l.b16 %v128
    %v450 = vunpack.c.l.b16 %v129
    %v451 = vunpack.c.l.b16 %v130
    %v452 = vunpack.c.l.b16 %v131
    %v453 = vunpack.c.l.b16 %v132
    %v454 = vunpack.c.l.b16 %v133
    %v455 = vunpack.c.l.b16 %v134
    %v456 = vunpack.c.l.b16 %v135
    %v457 = vunpack.c.l.b16 %v136
    %v458 = vunpack.c.l.b16 %v137
    %v459 = vunpack.c.l.b16 %v138
    %v460 = vunpack.c.l.b16 %v139
    %v461 = vunpack.c.l.b16 %v140
    %v462 = vunpack.c.l.b16 %v141
    %v463 = vunpack.c.l.b16 %v142
    %v464 = vunpack.c.l.b16 %v143
    %v465 = vunpack.c.l.b16 %v144
    %v466 = vunpack.c.l.b16 %v145
    %v467 = vunpack.c.l.b16 %v146
    %v468 = vunpack.c.l.b16 %v147
    %v469 = vunpack.c.l.b16 %v148
    %v470 = vunpack.c.l.b16 %v149
    %v471 = vunpack.c.l.b16 %v150
    %v472 = vunpack.c.l.b16 %v151
    %v473 = vunpack.c.l.b16 %v152
    %v474 = vunpack.c.l.b16 %v153
    %v475 = vunpack.c.l.b16 %v154
    %v476 = vunpack.c.l.b16 %v155
    %v477 = vunpack.c.l.b16 %v156
    %v478 = vunpack.c.l.b16 %v157
    %v479 = vunpack.c.l.b16 %v158
    %v480 = vunpack.c.l.b16 %v159
    %v481 = vunpack.c.l.b16 %v160
    %v482 = vpack.c.b16 %v355, %v354
    %v483 = vpack.c.b16 %v357, %v356
    %v484 = vpack.c.b16 %v359, %v358
    %v485 = vpack.c.b16 %v361, %v360
    %v486 = vpack.c.b16 %v363, %v362
    %v487 = vpack.c.b16 %v365, %v364
    %v488 = vpack.c.b16 %v367, %v366
    %v489 = vpack.c.b16 %v369, %v368
    %v490 = vpack.c.b16 %v371, %v370
    %v491 = vpack.c.b16 %v373, %v372
    %v492 = vpack.c.b16 %v375, %v374
    %v493 = vpack.c.b16 %v377, %v376
    %v494 = vpack.c.b16 %v379, %v378
    %v495 = vpack.c.b16 %v381, %v380
    %v496 = vpack.c.b16 %v383, %v382
    %v497 = vpack.c.b16 %v385, %v384
    %v498 = vpack.c.b16 %v387, %v386
    %v499 = vpack.c.b16 %v389, %v388
    %v500 = vpack.c.b16 %v391, %v390
    %v501 = vpack.c.b16 %v393, %v392
    %v502 = vpack.c.b16 %v395, %v394
    %v503 = vpack.c.b16 %v397, %v396
    %v504 = vpack.c.b16 %v399, %v398
    %v505 = vpack.c.b16 %v401, %v400
    %v506 = vpack.c.b16 %v403, %v402
    %v507 = vpack.c.b16 %v405, %v404
    %v508 = vpack.c.b16 %v407, %v406
    %v509 = vpack.c.b16 %v409, %v408
    %v510 = vpack.c.b16 %v411, %v410
    %v511 = vpack.c.b16 %v413, %v412
    %v512 = vpack.c.b16 %v415, %v414
    %v513 = vpack.c.b16 %v417, %v416
    %v514 = vpack.c.b16 %v419, %v418
    %v515 = vpack.c.b16 %v421, %v420
    %v516 = vpack.c.b16 %v423, %v422
    %v517 = vpack.c.b16 %v425, %v424
    %v518 = vpack.c.b16 %v427, %v426
    %v519 = vpack.c.b16 %v429, %v428
    %v520 = vpack.c.b16 %v431, %v430
    %v521 = vpack.c.b16 %v433, %v432
    %v522 = vpack.c.b16 %v435, %v434
    %v523 = vpack.c.b16 %v437, %v436
    %v524 = vpack.c.b16 %v439, %v438
    %v525 = vpack.c.b16 %v441, %v440
    %v526 = vpack.c.b16 %v443, %v442
    %v527 = vpack.c.b16 %v445, %v444
    %v528 = vpack.c.b16 %v447, %v446
    %v529 = vpack.c.b16 %v449, %v448
    %v530 = vpack.c.b16 %v451, %v450
    %v531 = vpack.c.b16 %v453, %v452
    %v532 = vpack.c.b16 %v455, %v454
    %v533 = vpack.c.b16 %v457, %v456
    %v534 = vpack.c.b16 %v459, %v458
    %v535 = vpack.c.b16 %v461, %v460
    %v536 = vpack.c.b16 %v463, %v462
    %v537 = vpack.c.b16 %v465, %v464
    %v538 = vpack.c.b16 %v467, %v466
    %v539 = vpack.c.b16 %v469, %v468
    %v540 = vpack.c.b16 %v471, %v470
    %v541 = vpack.c.b16 %v473, %v472
    %v542 = vpack.c.b16 %v475, %v474
    %v543 = vpack.c.b16 %v477, %v476
    %v544 = vpack.c.b16 %v479, %v478
    %v545 = vpack.c.b16 %v481, %v480
    %610 = vmatprep.subr.bf16.mxu0 0
    %611 = vmatpush1.bf16.msra.mxu0 %v482
    %612 = vmatprep.subr.bf16.mxu0 0
    %613 = vmatpush1.bf16.msra.mxu0 %v483
    %614 = vmatprep.subr.bf16.mxu0 0
    %615 = vmatpush1.bf16.msra.mxu0 %v484
    %616 = vmatprep.subr.bf16.mxu0 0
    %617 = vmatpush1.bf16.msra.mxu0 %v485
    %618 = vmatprep.subr.bf16.mxu0 0
    %619 = vmatpush1.bf16.msra.mxu0 %v486
    %620 = vmatprep.subr.bf16.mxu0 0
    %621 = vmatpush1.bf16.msra.mxu0 %v487
    %622 = vmatprep.subr.bf16.mxu0 0
    %623 = vmatpush1.bf16.msra.mxu0 %v488
    %624 = vmatprep.subr.bf16.mxu0 0
    %625 = vmatpush1.bf16.msra.mxu0 %v489
    %626 = vmatprep.subr.bf16.mxu0 0
    %627 = vmatpush1.bf16.msra.mxu0 %v490
    %628 = vmatprep.subr.bf16.mxu0 0
    %629 = vmatpush1.bf16.msra.mxu0 %v491
    %630 = vmatprep.subr.bf16.mxu0 0
    %631 = vmatpush1.bf16.msra.mxu0 %v492
    %632 = vmatprep.subr.bf16.mxu0 0
    %633 = vmatpush1.bf16.msra.mxu0 %v493
    %634 = vmatprep.subr.bf16.mxu0 0
    %635 = vmatpush1.bf16.msra.mxu0 %v494
    %636 = vmatprep.subr.bf16.mxu0 0
    %637 = vmatpush1.bf16.msra.mxu0 %v495
    %638 = vmatprep.subr.bf16.mxu0 0
    %639 = vmatpush1.bf16.msra.mxu0 %v496
    %640 = vmatprep.subr.bf16.mxu0 0
    %641 = vmatpush1.bf16.msra.mxu0 %v497
    %642 = vmatprep.mubr.bf16.mxu0 %v206
    %643 = vmatmul.mubr.bf16.gmra.mrb[0].mxu0 %v192
    %v644 = vpop.f32.mrb[0].mxu0
    %v645 = vadd.f32 %v166, %v644
    %v646 = vpop.f32.mrb[0].mxu0
    %v647 = vpop.f32.mrb[0].mxu0
    %v648 = vpop.f32.mrb[0].mxu0
    %649 = vdwg.mxu0
    %650 = vmatprep.subr.bf16.mxu0 0
    %651 = vmatpush1.bf16.msra.mxu0 %v498
    %652 = vmatprep.subr.bf16.mxu0 0
    %653 = vmatpush1.bf16.msra.mxu0 %v499
    %654 = vmatprep.subr.bf16.mxu0 0
    %655 = vmatpush1.bf16.msra.mxu0 %v500
    %656 = vmatprep.subr.bf16.mxu0 0
    %657 = vmatpush1.bf16.msra.mxu0 %v501
    %658 = vmatprep.subr.bf16.mxu0 0
    %659 = vmatpush1.bf16.msra.mxu0 %v502
    %660 = vmatprep.subr.bf16.mxu0 0
    %661 = vmatpush1.bf16.msra.mxu0 %v503
    %662 = vmatprep.subr.bf16.mxu0 0
    %663 = vmatpush1.bf16.msra.mxu0 %v504
    %664 = vmatprep.subr.bf16.mxu0 0
    %665 = vmatpush1.bf16.msra.mxu0 %v505
    %666 = vmatprep.subr.bf16.mxu0 0
    %667 = vmatpush1.bf16.msra.mxu0 %v506
    %668 = vmatprep.subr.bf16.mxu0 0
    %669 = vmatpush1.bf16.msra.mxu0 %v507
    %670 = vmatprep.subr.bf16.mxu0 0
    %671 = vmatpush1.bf16.msra.mxu0 %v508
    %672 = vmatprep.subr.bf16.mxu0 0
    %673 = vmatpush1.bf16.msra.mxu0 %v509
    %674 = vmatprep.subr.bf16.mxu0 0
    %675 = vmatpush1.bf16.msra.mxu0 %v510
    %676 = vmatprep.subr.bf16.mxu0 0
    %677 = vmatpush1.bf16.msra.mxu0 %v511
    %678 = vmatprep.subr.bf16.mxu0 0
    %679 = vmatpush1.bf16.msra.mxu0 %v512
    %680 = vmatprep.subr.bf16.mxu0 0
    %681 = vmatpush1.bf16.msra.mxu0 %v513
    %682 = vmatprep.mubr.bf16.mxu0 %v216
    %683 = vmatmul.mubr.bf16.gmra.mrb[0].mxu0 %v214
    %v684 = vpop.f32.mrb[0].mxu0
    %v685 = vadd.f32 %v645, %v684
    %v686 = vpop.f32.mrb[0].mxu0
    %v687 = vpop.f32.mrb[0].mxu0
    %v688 = vpop.f32.mrb[0].mxu0
    %689 = vdwg.mxu0
    %690 = vmatprep.subr.bf16.mxu0 0
    %691 = vmatpush1.bf16.msra.mxu0 %v514
    %692 = vmatprep.subr.bf16.mxu0 0
    %693 = vmatpush1.bf16.msra.mxu0 %v515
    %694 = vmatprep.subr.bf16.mxu0 0
    %695 = vmatpush1.bf16.msra.mxu0 %v516
    %696 = vmatprep.subr.bf16.mxu0 0
    %697 = vmatpush1.bf16.msra.mxu0 %v517
    %698 = vmatprep.subr.bf16.mxu0 0
    %699 = vmatpush1.bf16.msra.mxu0 %v518
    %700 = vmatprep.subr.bf16.mxu0 0
    %701 = vmatpush1.bf16.msra.mxu0 %v519
    %702 = vmatprep.subr.bf16.mxu0 0
    %703 = vmatpush1.bf16.msra.mxu0 %v520
    %704 = vmatprep.subr.bf16.mxu0 0
    %705 = vmatpush1.bf16.msra.mxu0 %v521
    %706 = vmatprep.subr.bf16.mxu0 0
    %707 = vmatpush1.bf16.msra.mxu0 %v522
    %708 = vmatprep.subr.bf16.mxu0 0
    %709 = vmatpush1.bf16.msra.mxu0 %v523
    %710 = vmatprep.subr.bf16.mxu0 0
    %711 = vmatpush1.bf16.msra.mxu0 %v524
    %712 = vmatprep.subr.bf16.mxu0 0
    %713 = vmatpush1.bf16.msra.mxu0 %v525
    %714 = vmatprep.subr.bf16.mxu0 0
    %715 = vmatpush1.bf16.msra.mxu0 %v526
    %716 = vmatprep.subr.bf16.mxu0 0
    %717 = vmatpush1.bf16.msra.mxu0 %v527
    %718 = vmatprep.subr.bf16.mxu0 0
    %719 = vmatpush1.bf16.msra.mxu0 %v528
    %720 = vmatprep.subr.bf16.mxu0 0
    %721 = vmatpush1.bf16.msra.mxu0 %v529
    %722 = vmatprep.mubr.bf16.mxu0 %v213
    %723 = vmatmul.mubr.bf16.gmra.mrb[0].mxu0 %v199
    %v724 = vpop.f32.mrb[0].mxu0
    %v725 = vadd.f32 %v685, %v724
    %v726 = vpop.f32.mrb[0].mxu0
    %v727 = vpop.f32.mrb[0].mxu0
    %v728 = vpop.f32.mrb[0].mxu0
    %729 = vdwg.mxu0
    %730 = vmatprep.subr.bf16.mxu0 0
    %731 = vmatpush1.bf16.msra.mxu0 %v530
    %732 = vmatprep.subr.bf16.mxu0 0
    %733 = vmatpush1.bf16.msra.mxu0 %v531
    %734 = vmatprep.subr.bf16.mxu0 0
    %735 = vmatpush1.bf16.msra.mxu0 %v532
    %736 = vmatprep.subr.bf16.mxu0 0
    %737 = vmatpush1.bf16.msra.mxu0 %v533
    %738 = vmatprep.subr.bf16.mxu0 0
    %739 = vmatpush1.bf16.msra.mxu0 %v534
    %740 = vmatprep.subr.bf16.mxu0 0
    %741 = vmatpush1.bf16.msra.mxu0 %v535
    %742 = vmatprep.subr.bf16.mxu0 0
    %743 = vmatpush1.bf16.msra.mxu0 %v536
    %744 = vmatprep.subr.bf16.mxu0 0
    %745 = vmatpush1.bf16.msra.mxu0 %v537
    %746 = vmatprep.subr.bf16.mxu0 0
    %747 = vmatpush1.bf16.msra.mxu0 %v538
    %748 = vmatprep.subr.bf16.mxu0 0
    %749 = vmatpush1.bf16.msra.mxu0 %v539
    %750 = vmatprep.subr.bf16.mxu0 0
    %751 = vmatpush1.bf16.msra.mxu0 %v540
    %752 = vmatprep.subr.bf16.mxu0 0
    %753 = vmatpush1.bf16.msra.mxu0 %v541
    %754 = vmatprep.subr.bf16.mxu0 0
    %755 = vmatpush1.bf16.msra.mxu0 %v542
    %756 = vmatprep.subr.bf16.mxu0 0
    %757 = vmatpush1.bf16.msra.mxu0 %v543
    %758 = vmatprep.subr.bf16.mxu0 0
    %759 = vmatpush1.bf16.msra.mxu0 %v544
    %760 = vmatprep.subr.bf16.mxu0 0
    %761 = vmatpush1.bf16.msra.mxu0 %v545
    %762 = vmatprep.mubr.bf16.mxu0 %v217
    %763 = vmatmul.mubr.bf16.gmra.mrb[0].mxu0 %v215
    %v764 = vpop.f32.mrb[0].mxu0
    %v765 = vadd.f32 %v725, %v764
    %v766 = vpop.f32.mrb[0].mxu0
    %v767 = vpop.f32.mrb[0].mxu0
    %v768 = vpop.f32.mrb[0].mxu0
    %769 = vdwg.mxu0
    %v770 = vmax.f32 %v765, 0.0
    %v771 = vld [vmem:[%s3] sm:$0xff]
    %v772 = vld [vmem:[%s3 + $0x8] sm:$0xff]
    %v773 = vld [vmem:[%s3 + $0x10] sm:$0xff]
    %v774 = vld [vmem:[%s3 + $0x18] sm:$0xff]
    %v775 = vld [vmem:[%s4] sm:$0x1]
    %v777 = vlaneseq
    %v778 = vshrl.u32 %v777, 7
    %v779 = vsub.s32 0, %v778
    %v780 = vrot.slane %v775, %v779
    %vm782 = vcmask 261120
    %v784 = vsel %vm782, %v770, 0
    %786 = vmatprep.subr.mxu0 0.0
    %787 = vmatpush1.msra.mxu0 %v771
    %788 = vmatprep.subr.mxu0 0.0
    %789 = vmatpush1.msra.mxu0 %v772
    %790 = vmatprep.subr.mxu0 0.0
    %791 = vmatpush1.msra.mxu0 %v773
    %792 = vmatprep.subr.mxu0 0.0
    %793 = vmatpush1.msra.mxu0 %v774
    %794 = vmatprep.subr.mxu0 0.0
    %795 = vmatpush1.msra.mxu0 0.0
    %796 = vmatprep.subr.mxu0 0.0
    %797 = vmatpush1.msra.mxu0 0.0
    %798 = vmatprep.subr.mxu0 0.0
    %799 = vmatpush1.msra.mxu0 0.0
    %800 = vmatprep.subr.mxu0 0.0
    %801 = vmatpush1.msra.mxu0 0.0
    %802 = vmatprep.subr.mxu0 0.0
    %803 = vmatpush1.msra.mxu0 0.0
    %804 = vmatprep.subr.mxu0 0.0
    %805 = vmatpush1.msra.mxu0 0.0
    %806 = vmatprep.subr.mxu0 0.0
    %807 = vmatpush1.msra.mxu0 0.0
    %808 = vmatprep.subr.mxu0 0.0
    %809 = vmatpush1.msra.mxu0 0.0
    %810 = vmatprep.subr.mxu0 0.0
    %811 = vmatpush1.msra.mxu0 0.0
    %812 = vmatprep.subr.mxu0 0.0
    %813 = vmatpush1.msra.mxu0 0.0
    %814 = vmatprep.subr.mxu0 0.0
    %815 = vmatpush1.msra.mxu0 0.0
    %816 = vmatprep.subr.mxu0 0.0
    %817 = vmatpush1.msra.mxu0 0.0
    %818 = vmatprep.subr.mxu0 0.0
    %819 = vmatpush1.msra.mxu0 0.0
    %820 = vmatprep.subr.mxu0 0.0
    %821 = vmatpush1.msra.mxu0 0.0
    %822 = vmatprep.subr.mxu0 0.0
    %823 = vmatpush1.msra.mxu0 0.0
    %824 = vmatprep.subr.mxu0 0.0
    %825 = vmatpush1.msra.mxu0 0.0
    %826 = vmatprep.subr.mxu0 0.0
    %827 = vmatpush1.msra.mxu0 0.0
    %828 = vmatprep.subr.mxu0 0.0
    %829 = vmatpush1.msra.mxu0 0.0
    %830 = vmatprep.subr.mxu0 0.0
    %831 = vmatpush1.msra.mxu0 0.0
    %832 = vmatprep.subr.mxu0 0.0
    %833 = vmatpush1.msra.mxu0 0.0
    %834 = vmatprep.subr.mxu0 0.0
    %835 = vmatpush1.msra.mxu0 0.0
    %836 = vmatprep.subr.mxu0 0.0
    %837 = vmatpush1.msra.mxu0 0.0
    %838 = vmatprep.subr.mxu0 0.0
    %839 = vmatpush1.msra.mxu0 0.0
    %840 = vmatprep.subr.mxu0 0.0
    %841 = vmatpush1.msra.mxu0 0.0
    %842 = vmatprep.subr.mxu0 0.0
    %843 = vmatpush1.msra.mxu0 0.0
    %844 = vmatprep.subr.mxu0 0.0
    %845 = vmatpush1.msra.mxu0 0.0
    %846 = vmatprep.subr.mxu0 0.0
    %847 = vmatpush1.msra.mxu0 0.0
    %848 = vmatprep.subr.mxu0 0.0
    %849 = vmatpush1.msra.mxu0 0.0
    %850 = vmatprep.mubr.f32.mxu0 0.0
    %851 = vmatmul.mubr.f32.gmra.mrb[0].mxu0 %v784
    %v852 = vpop.f32.mrb[0].mxu0
    %v853 = vadd.f32 %v780, %v852
    %v854 = vpop.f32.mrb[0].mxu0
    %855 = vdwg.mxu0
    %v856 = vmul.f32 %v770, %v770
    %vm857 = vcmask 254976
    %v858 = vsel %vm857, %v856, 0.0
    %859 = vadd.xlane.f32.xlu0 %v858
    %v860 = vpop.xlane.xlu0 %859
    %v861 = vld [vmem:[%s5] sm:$0xff]
    %v862 = vld [vmem:[%s5 + $0x8] sm:$0xff]
    %v863 = vld [vmem:[%s5 + $0x10] sm:$0xff]
    %v864 = vld [vmem:[%s5 + $0x18] sm:$0xff]
    %865 = vmatprep.subr.mxu0 0.0
    %866 = vmatpush1.msra.mxu0 %v861
    %867 = vmatprep.subr.mxu0 0.0
    %868 = vmatpush1.msra.mxu0 %v862
    %869 = vmatprep.subr.mxu0 0.0
    %870 = vmatpush1.msra.mxu0 %v863
    %871 = vmatprep.subr.mxu0 0.0
    %872 = vmatpush1.msra.mxu0 %v864
    %873 = vmatprep.subr.mxu0 0.0
    %874 = vmatpush1.msra.mxu0 0.0
    %875 = vmatprep.subr.mxu0 0.0
    %876 = vmatpush1.msra.mxu0 0.0
    %877 = vmatprep.subr.mxu0 0.0
    %878 = vmatpush1.msra.mxu0 0.0
    %879 = vmatprep.subr.mxu0 0.0
    %880 = vmatpush1.msra.mxu0 0.0
    %881 = vmatprep.subr.mxu0 0.0
    %882 = vmatpush1.msra.mxu0 0.0
    %883 = vmatprep.subr.mxu0 0.0
    %884 = vmatpush1.msra.mxu0 0.0
    %885 = vmatprep.subr.mxu0 0.0
    %886 = vmatpush1.msra.mxu0 0.0
    %887 = vmatprep.subr.mxu0 0.0
    %888 = vmatpush1.msra.mxu0 0.0
    %889 = vmatprep.subr.mxu0 0.0
    %890 = vmatpush1.msra.mxu0 0.0
    %891 = vmatprep.subr.mxu0 0.0
    %892 = vmatpush1.msra.mxu0 0.0
    %893 = vmatprep.subr.mxu0 0.0
    %894 = vmatpush1.msra.mxu0 0.0
    %895 = vmatprep.subr.mxu0 0.0
    %896 = vmatpush1.msra.mxu0 0.0
    %897 = vmatprep.subr.mxu0 0.0
    %898 = vmatpush1.msra.mxu0 0.0
    %899 = vmatprep.subr.mxu0 0.0
    %900 = vmatpush1.msra.mxu0 0.0
    %901 = vmatprep.subr.mxu0 0.0
    %902 = vmatpush1.msra.mxu0 0.0
    %903 = vmatprep.subr.mxu0 0.0
    %904 = vmatpush1.msra.mxu0 0.0
    %905 = vmatprep.subr.mxu0 0.0
    %906 = vmatpush1.msra.mxu0 0.0
    %907 = vmatprep.subr.mxu0 0.0
    %908 = vmatpush1.msra.mxu0 0.0
    %909 = vmatprep.subr.mxu0 0.0
    %910 = vmatpush1.msra.mxu0 0.0
    %911 = vmatprep.subr.mxu0 0.0
    %912 = vmatpush1.msra.mxu0 0.0
    %913 = vmatprep.subr.mxu0 0.0
    %914 = vmatpush1.msra.mxu0 0.0
    %915 = vmatprep.subr.mxu0 0.0
    %916 = vmatpush1.msra.mxu0 0.0
    %917 = vmatprep.subr.mxu0 0.0
    %918 = vmatpush1.msra.mxu0 0.0
    %919 = vmatprep.subr.mxu0 0.0
    %920 = vmatpush1.msra.mxu0 0.0
    %921 = vmatprep.subr.mxu0 0.0
    %922 = vmatpush1.msra.mxu0 0.0
    %923 = vmatprep.subr.mxu0 0.0
    %924 = vmatpush1.msra.mxu0 0.0
    %925 = vmatprep.subr.mxu0 0.0
    %926 = vmatpush1.msra.mxu0 0.0
    %927 = vmatprep.subr.mxu0 0.0
    %928 = vmatpush1.msra.mxu0 0.0
    %929 = vmatprep.mubr.f32.mxu0 0.0
    %930 = vmatmul.mubr.f32.gmra.mrb[0].mxu0 %v784
    %v931 = vpop.f32.mrb[0].mxu0
    %v932 = vadd.f32 0.0, %v931
    %v933 = vpop.f32.mrb[0].mxu0
    %934 = vdwg.mxu0
    %v935 = vld [vmem:[%s6] sm:$0x1]
    %v937 = vlaneseq
    %v938 = vshrl.u32 %v937, 7
    %v939 = vsub.s32 0, %v938
    %v940 = vrot.slane %v935, %v939
    %v942 = vadd.f32 %v860, %v940
    %v943 = vmul.f32 %v932, 2.0
    %v944 = vsub.f32 %v942, %v943
    %v945 = vmax.f32 %v944, 0.0
    %v946 = vlaneseq
    %v947 = vand.u32 %v946, 127
    %vm948 = vcmask 517120
    %v949 = vsel %vm948, %v945, inf
    %950 = vmin.xlane.f32.xlu0 %v949
    %v951 = vpop.xlane.xlu0 %950
    %v952 = vrsqrt.pop %v951
    %v953 = vmul.f32 %v951, %v952
    %vm954 = vcmp.eq.f32.partialorder %v951, inf
    %v955 = vsel %vm954, %v951, %v953
    %vm956 = vcmp.eq.f32.partialorder %v951, 0.0
    %v957 = vand.u32 %v951, 2147483648
    %v958 = vsel %vm956, %v957, %v955
    %v959 = vadd.f32 %v958, 0.0
    %vm960 = vcmp.le.f32.partialorder %v945, %v951
    %v961 = vsel %vm960, %v947, 64
    %v962 = vsel %vm948, %v961, 2147483647
    %v963 = vand.u32 %v962, 65535
    %v964 = vshra.s32 %v962, 16
    %v965 = vcvt.s32.f32 %v963
    %v966 = vcvt.s32.f32 %v964
    %967 = vmin.xlane.f32.xlu0 %v966
    %v968 = vpop.xlane.xlu0 %967
    %vm969 = vcmp.eq.f32.partialorder %v966, %v968
    %v970 = vsel %vm969, %v965, inf
    %971 = vmin.xlane.f32.xlu0 %v970
    %v972 = vpop.xlane.xlu0 %971
    %v973 = vcvt.f32.s32 %v972
    %v974 = vcvt.f32.s32 %v968
    %v975 = vshll.u32 %v974, 16
    %v976 = vadd.s32 %v975, %v973
    %vm977 = vcmp.eq.s32.totalorder %v947, %v976
    %v978 = vsel %vm977, inf, %v945
    %v979 = vsel %vm948, %v978, inf
    %980 = vmin.xlane.f32.xlu0 %v979
    %v981 = vpop.xlane.xlu0 %980
    %v982 = vrsqrt.pop %v981
    %v983 = vmul.f32 %v981, %v982
    %vm984 = vcmp.eq.f32.partialorder %v981, inf
    %v985 = vsel %vm984, %v981, %v983
    %vm986 = vcmp.eq.f32.partialorder %v981, 0.0
    %v987 = vand.u32 %v981, 2147483648
    %v988 = vsel %vm986, %v987, %v985
    %v989 = vadd.f32 %v959, %v988
    %vm990 = vcmp.le.f32.partialorder %v978, %v981
    %v991 = vsel %vm990, %v947, 64
    %v992 = vsel %vm948, %v991, 2147483647
    %v993 = vand.u32 %v992, 65535
    %v994 = vshra.s32 %v992, 16
    %v995 = vcvt.s32.f32 %v993
    %v996 = vcvt.s32.f32 %v994
    %997 = vmin.xlane.f32.xlu0 %v996
    %v998 = vpop.xlane.xlu0 %997
    %vm999 = vcmp.eq.f32.partialorder %v996, %v998
    %v1000 = vsel %vm999, %v995, inf
    %1001 = vmin.xlane.f32.xlu0 %v1000
    %v1002 = vpop.xlane.xlu0 %1001
    %v1003 = vcvt.f32.s32 %v1002
    %v1004 = vcvt.f32.s32 %v998
    %v1005 = vshll.u32 %v1004, 16
    %v1006 = vadd.s32 %v1005, %v1003
    %vm1007 = vcmp.eq.s32.totalorder %v947, %v1006
    %v1008 = vsel %vm1007, inf, %v978
    %v1009 = vsel %vm948, %v1008, inf
    %1010 = vmin.xlane.f32.xlu0 %v1009
    %v1011 = vpop.xlane.xlu0 %1010
    %v1012 = vrsqrt.pop %v1011
    %v1013 = vmul.f32 %v1011, %v1012
    %vm1014 = vcmp.eq.f32.partialorder %v1011, inf
    %v1015 = vsel %vm1014, %v1011, %v1013
    %vm1016 = vcmp.eq.f32.partialorder %v1011, 0.0
    %v1017 = vand.u32 %v1011, 2147483648
    %v1018 = vsel %vm1016, %v1017, %v1015
    %v1019 = vadd.f32 %v989, %v1018
    %vm1020 = vcmp.le.f32.partialorder %v1008, %v1011
    %v1021 = vsel %vm1020, %v947, 64
    %v1022 = vsel %vm948, %v1021, 2147483647
    %v1023 = vand.u32 %v1022, 65535
    %v1024 = vshra.s32 %v1022, 16
    %v1025 = vcvt.s32.f32 %v1023
    %v1026 = vcvt.s32.f32 %v1024
    %1027 = vmin.xlane.f32.xlu0 %v1026
    %v1028 = vpop.xlane.xlu0 %1027
    %vm1029 = vcmp.eq.f32.partialorder %v1026, %v1028
    %v1030 = vsel %vm1029, %v1025, inf
    %1031 = vmin.xlane.f32.xlu0 %v1030
    %v1032 = vpop.xlane.xlu0 %1031
    %v1033 = vcvt.f32.s32 %v1032
    %v1034 = vcvt.f32.s32 %v1028
    %v1035 = vshll.u32 %v1034, 16
    %v1036 = vadd.s32 %v1035, %v1033
    %vm1037 = vcmp.eq.s32.totalorder %v947, %v1036
    %v1038 = vsel %vm1037, inf, %v1008
    %v1039 = vsel %vm948, %v1038, inf
    %1040 = vmin.xlane.f32.xlu0 %v1039
    %v1041 = vpop.xlane.xlu0 %1040
    %v1042 = vrsqrt.pop %v1041
    %v1043 = vmul.f32 %v1041, %v1042
    %vm1044 = vcmp.eq.f32.partialorder %v1041, inf
    %v1045 = vsel %vm1044, %v1041, %v1043
    %vm1046 = vcmp.eq.f32.partialorder %v1041, 0.0
    %v1047 = vand.u32 %v1041, 2147483648
    %v1048 = vsel %vm1046, %v1047, %v1045
    %v1049 = vadd.f32 %v1019, %v1048
    %vm1050 = vcmp.le.f32.partialorder %v1038, %v1041
    %v1051 = vsel %vm1050, %v947, 64
    %v1052 = vsel %vm948, %v1051, 2147483647
    %v1053 = vand.u32 %v1052, 65535
    %v1054 = vshra.s32 %v1052, 16
    %v1055 = vcvt.s32.f32 %v1053
    %v1056 = vcvt.s32.f32 %v1054
    %1057 = vmin.xlane.f32.xlu0 %v1056
    %v1058 = vpop.xlane.xlu0 %1057
    %vm1059 = vcmp.eq.f32.partialorder %v1056, %v1058
    %v1060 = vsel %vm1059, %v1055, inf
    %1061 = vmin.xlane.f32.xlu0 %v1060
    %v1062 = vpop.xlane.xlu0 %1061
    %v1063 = vcvt.f32.s32 %v1062
    %v1064 = vcvt.f32.s32 %v1058
    %v1065 = vshll.u32 %v1064, 16
    %v1066 = vadd.s32 %v1065, %v1063
    %vm1067 = vcmp.eq.s32.totalorder %v947, %v1066
    %v1068 = vsel %vm1067, inf, %v1038
    %v1069 = vsel %vm948, %v1068, inf
    %1070 = vmin.xlane.f32.xlu0 %v1069
    %v1071 = vpop.xlane.xlu0 %1070
    %v1072 = vrsqrt.pop %v1071
    %v1073 = vmul.f32 %v1071, %v1072
    %vm1074 = vcmp.eq.f32.partialorder %v1071, inf
    %v1075 = vsel %vm1074, %v1071, %v1073
    %vm1076 = vcmp.eq.f32.partialorder %v1071, 0.0
    %v1077 = vand.u32 %v1071, 2147483648
    %v1078 = vsel %vm1076, %v1077, %v1075
    %v1079 = vadd.f32 %v1049, %v1078
    %v1080 = vrcp.pop 5.0
    %v1081 = vmul.f32 %v1079, %v1080
    %s1082 = sld [smem:[#allocation2]]
    %v1083 = vstv %s1082
    %vm1084 = vcmp.gt.f32.partialorder %v1081, %v1083
    %v1085 = vsel %vm1084, 1, 0
    %vm1086 = vcmp.eq.s32.totalorder %v1085, 1
    %v1087 = vsel %vm1086, 0.0, %v853
    %vm1088 = vcmask 74752
    %1089 = vst.msk [vmem:[#allocation3] sm:$0x3] %vm1088, %v1087
    // Predicated region
    $region34: #{tpu_custom_call.1} parent=1 // pred_check
      _
    $region35: #{tpu_custom_call.1} parent=1 // pred_check_branch
      %1091 = sbr.rel (0) target = $region37
    $region36: #{tpu_custom_call.1} parent=1 // pred_region
      %s1093 = ssub.s32 32, 32
      %1094 = vsyncadd [#allocation4], %s1093
      %s1096 = sshll.u32 [#allocation3], 4
      %s1097 = int_to_ptr.vmem [resolvable:$true] %s1096
      %1099 = dma.vmem_to_hbm [thread:$0]  %s1097, 32, %s8, [#allocation4]
    $region37: #{tpu_custom_call.1} parent=1 // pred_fallthru
      _
    // Predicated region
    $region38: #{tpu_custom_call.1} parent=1 // pred_check
      _
    $region39: #{tpu_custom_call.1} parent=1 // pred_check_branch
      %1101 = sbr.rel (0) target = $region41
    $region40: #{tpu_custom_call.1} parent=1 // pred_region
      %1102 = dma.done [#allocation4], 32
    $region41: #{tpu_custom_call.1} parent=1 // pred_fallthru
      _
    %1103 = vsyncpa [#allocation4], 1

</llo_original>
